<compile_context>
chip_gen: v6e
topology: v6e:2x2x1
jax: 0.10.0
libtpu: 0.0.40
codegen_flags: <defaults>
</compile_context>

<pallas_src>
import jax
import jax.numpy as jnp
from jax.experimental import pallas as pl
from jax.experimental.pallas import tpu as pltpu


def _patch_embed_kernel(x_ref, w_ref, add_ref, o_ref):
    # x_ref:   (TB, C, Hp, P*W)  streamed image tile (raw NCHW layout)
    # w_ref:   (C, P*W, Wp*E)    permuted block-diagonal weight (resident)
    # add_ref: (1, Wp*E)         bias + positional embedding row (resident)
    # o_ref:   (TB, Hp, Wp*E)    lane-dense output tile
    tb, c_dim = x_ref.shape[0], x_ref.shape[1]
    add = add_ref[...]
    for t in range(tb):                       # small, static unroll
        acc = jnp.dot(x_ref[t, 0], w_ref[0], preferred_element_type=jnp.float32)
        for c in range(1, c_dim):             # channel reduction, static unroll
            acc = acc + jnp.dot(x_ref[t, c], w_ref[c],
                                preferred_element_type=jnp.float32)
        o_ref[t] = (acc + add).astype(o_ref.dtype)


def patch_embedding_forward(x, weight, bias, pos_emb, patch_size, *,
                            matmul_dtype=None, step_target_bytes=2 << 20):
    """x: (B, C, H, W) NCHW.  weight: (E, C*P*P).  bias: (E,).
    pos_emb: (1, num_patches+1, E).  Returns (B, H//P, W//P, E)."""
    B, C, H, W = x.shape
    P = patch_size
    assert H % P == 0 and W % P == 0, "spatial dims must be multiples of patch_size"
    Hp, Wp = H // P, W // P
    E = weight.shape[0]
    K = C * P * P
    assert weight.shape == (E, K)
    # The torch broadcast `x + pos[:, :Hp, :]` aligns pos' Hp axis with x's Wp
    # axis (trailing-dim alignment), which requires Hp == Wp — mirrored here.
    assert Hp == Wp, "positional-embedding broadcast requires Hp == Wp"

    out_dtype = x.dtype
    cdt = jnp.dtype(matmul_dtype) if matmul_dtype is not None else jnp.dtype(x.dtype)

    Q = Wp * E        # width of one lane-dense output row (one (b, hp) slab)
    PW = P * W        # per-channel contraction width

    # --- kernel inputs (no HBM copies of x) ----------------------------------
    # Contiguous reshape: element (b, c, hp*P+ph, w) -> (b, c, hp, ph*W + w).
    x6 = x.reshape(B, C, Hp, PW).astype(cdt)

    # Permuted block-diagonal weight, built host-side (zero runtime cost):
    #   w_big[c, ph*W + wp*P + pw, wp'*E + e] = weight[e, c*P*P + ph*P + pw] * (wp == wp')
    # so one (Hp, P*W) @ (P*W, Wp*E) matmul per (image, channel) emits a full
    # row of Wp lane-packed patch embeddings.  Exact: extra products are * 0.
    w_t = weight.T.reshape(C, P, P, E).astype(jnp.float32)    # (c, ph, pw, e)
    eye = jnp.eye(Wp, dtype=jnp.float32)
    w_big = jnp.einsum("cpae,wv->cpwave", w_t, eye).reshape(C, PW, Q).astype(cdt)

    # bias + positional embedding folded into one small additive row.  The
    # torch broadcast adds pos_emb[0, wp, :] where wp is the *column* patch
    # index (likely a bug in the original module, but mirrored faithfully).
    add_row = (pos_emb[0, :Wp, :].astype(jnp.float32)
               + bias.astype(jnp.float32)[None, :]).reshape(1, Q)

    # --- per-generation VMEM budget & batch tile ------------------------------
    try:
        vmem_cap = pltpu.get_tpu_info().vmem_capacity_bytes
    except Exception:
        vmem_cap = 64 * 1024 * 1024        # conservative: v7x physical VMEM
    vmem_budget = max(32 * 1024 * 1024, min(vmem_cap * 3 // 4, 96 * 1024 * 1024))

    in_bytes_per_img = C * Hp * PW * cdt.itemsize
    out_bytes_per_img = Hp * Q * jnp.dtype(out_dtype).itemsize
    resident_bytes = C * PW * Q * cdt.itemsize + Q * 4
    per_img = in_bytes_per_img + out_bytes_per_img

    tb = max(1, min(B, step_target_bytes // max(per_img, 1)))
    if B >= 2:
        tb = min(tb, B // 2)               # keep >= 2 grid steps (v7x: 2 TCs)
    # streamed in/out tiles are double-buffered; resident operands too (default)
    while tb > 1 and 2 * resident_bytes + 2 * tb * per_img > vmem_budget * 3 // 4:
        tb -= 1
    while B % tb:                          # tb must divide B (no padding needed)
        tb -= 1
    grid_b = B // tb

    flops = 2 * B * C * Hp * PW * Q
    bytes_accessed = ((B * C * Hp * PW + C * PW * Q) * cdt.itemsize
                      + Q * 4
                      + B * Hp * Q * jnp.dtype(out_dtype).itemsize)

    out3 = pl.pallas_call(
        _patch_embed_kernel,
        out_shape=jax.ShapeDtypeStruct((B, Hp, Q), out_dtype),
        grid=(grid_b,),
        in_specs=[
            pl.BlockSpec((tb, C, Hp, PW), lambda i: (i, 0, 0, 0)),  # streamed x
            pl.BlockSpec((C, PW, Q), lambda i: (0, 0, 0)),          # resident weight
            pl.BlockSpec((1, Q), lambda i: (0, 0)),                 # resident bias+pos
        ],
        out_specs=pl.BlockSpec((tb, Hp, Q), lambda i: (i, 0, 0)),
        compiler_params=pltpu.CompilerParams(
            dimension_semantics=("parallel",),
            vmem_limit_bytes=int(vmem_budget),
        ),
        cost_estimate=pl.CostEstimate(
            flops=flops, transcendentals=0, bytes_accessed=bytes_accessed),
    )(x6, w_big, add_row)

    # contiguous split of the lane-packed rows -> (B, Hp, Wp, E); free.
    return out3.reshape(B, Hp, Wp, E)


def _reference(x, weight, bias, pos_emb, P):
    """Pure-JAX mirror of the PyTorch forward, for validation."""
    B, C, H, W = x.shape
    Hp, Wp = H // P, W // P
    patches = (
        x.reshape(B, C, Hp, P, Wp, P)
        .transpose(0, 2, 4, 1, 3, 5)
        .reshape(B, Hp, Wp, -1)
    )
    y = patches @ weight.T + bias
    y = y + pos_emb[:, :Hp, :]            # same trailing-dim broadcast as torch
    return y


if __name__ == "__main__":
    # Small shapes consistent with the module:
    # input_shape = (C, H, W) = (4, 16, 16), patch_size = 4, embedding_dim = 32
    B, C, H, W = 2, 4, 16, 16
    P = 4
    E = 32
    Hp, Wp = H // P, W // P
    num_patches = Hp * Wp
    K = C * P * P

    key = jax.random.PRNGKey(0)
    kx, kw, kb, kp = jax.random.split(key, 4)
    x = jax.random.normal(kx, (B, C, H, W), dtype=jnp.float32)
    weight = jax.random.normal(kw, (E, K), dtype=jnp.float32) * (1.0 / K ** 0.5)
    bias = jax.random.normal(kb, (E,), dtype=jnp.float32) * 0.01
    pos_emb = jax.random.normal(kp, (1, num_patches + 1, E), dtype=jnp.float32)

    out = patch_embedding_forward(x, weight, bias, pos_emb, P)
    out = jax.block_until_ready(out)

    ref = _reference(x, weight, bias, pos_emb, P)
    assert out.shape == (B, Hp, Wp, E), out.shape
    assert jnp.allclose(out, ref, atol=1e-4, rtol=1e-4), "mismatch vs reference"
    print("KERNEL_OK")
</pallas_src>

<mosaic_0001>
module attributes {stable_mosaic.version = 11 : i64} {
  func.func @_patch_embed_kernel(%arg0: i32, %arg1: memref<1x4x4x64xf32, #tpu.memory_space<vmem>>, %arg2: memref<4x64x128xf32, #tpu.memory_space<vmem>>, %arg3: memref<1x128xf32, #tpu.memory_space<vmem>>, %arg4: memref<1x4x128xf32, #tpu.memory_space<vmem>>) attributes {dimension_semantics = [#tpu.dimension_semantics<parallel>], iteration_bounds = array<i64: 2>, scalar_prefetch = 0 : i64, scratch_operands = 0 : i64, tpu.core_type = #tpu.core_type<tc>, window_params = [{transform_indices = @transform_0, window_bounds = array<i64: 1, 4, 4, 64>}, {pipeline_mode = #tpu.pipeline_mode<synchronous>, transform_indices = @transform_1, window_bounds = array<i64: 4, 64, 128>}, {pipeline_mode = #tpu.pipeline_mode<synchronous>, transform_indices = @transform_2, window_bounds = array<i64: 1, 128>}, {transform_indices = @transform_3, window_bounds = array<i64: 1, 4, 128>}]} {
    %c0 = arith.constant 0 : index
    %c0_0 = arith.constant 0 : index
    %0 = vector.load %arg3[%c0, %c0_0] : memref<1x128xf32, #tpu.memory_space<vmem>>, vector<1x128xf32>
    %c0_1 = arith.constant 0 : index
    %c0_2 = arith.constant 0 : index
    %c0_3 = arith.constant 0 : index
    %c0_4 = arith.constant 0 : index
    %1 = vector.load %arg1[%c0_1, %c0_2, %c0_3, %c0_4] : memref<1x4x4x64xf32, #tpu.memory_space<vmem>>, vector<1x1x4x64xf32>
    %2 = vector.shape_cast %1 : vector<1x1x4x64xf32> to vector<4x64xf32>
    %c0_5 = arith.constant 0 : index
    %c0_6 = arith.constant 0 : index
    %c0_7 = arith.constant 0 : index
    %3 = vector.load %arg2[%c0_5, %c0_6, %c0_7] : memref<4x64x128xf32, #tpu.memory_space<vmem>>, vector<1x64x128xf32>
    %4 = vector.shape_cast %3 : vector<1x64x128xf32> to vector<64x128xf32>
    %cst = arith.constant dense<0.000000e+00> : vector<4x128xf32>
    %5 = tpu.matmul %2, %4, %cst {dimension_numbers = #tpu.dot_dimension_numbers<[1], [0], [0], [1], [0, 0, 1, 1], [], []>} : vector<4x64xf32>, vector<64x128xf32>, vector<4x128xf32> -> vector<4x128xf32>
    %c0_8 = arith.constant 0 : index
    %c1 = arith.constant 1 : index
    %c0_9 = arith.constant 0 : index
    %c0_10 = arith.constant 0 : index
    %6 = vector.load %arg1[%c0_8, %c1, %c0_9, %c0_10] : memref<1x4x4x64xf32, #tpu.memory_space<vmem>>, vector<1x1x4x64xf32>
    %7 = vector.shape_cast %6 : vector<1x1x4x64xf32> to vector<4x64xf32>
    %c1_11 = arith.constant 1 : index
    %c0_12 = arith.constant 0 : index
    %c0_13 = arith.constant 0 : index
    %8 = vector.load %arg2[%c1_11, %c0_12, %c0_13] : memref<4x64x128xf32, #tpu.memory_space<vmem>>, vector<1x64x128xf32>
    %9 = vector.shape_cast %8 : vector<1x64x128xf32> to vector<64x128xf32>
    %cst_14 = arith.constant dense<0.000000e+00> : vector<4x128xf32>
    %10 = tpu.matmul %7, %9, %cst_14 {dimension_numbers = #tpu.dot_dimension_numbers<[1], [0], [0], [1], [0, 0, 1, 1], [], []>} : vector<4x64xf32>, vector<64x128xf32>, vector<4x128xf32> -> vector<4x128xf32>
    %11 = arith.addf %5, %10 : vector<4x128xf32>
    %c0_15 = arith.constant 0 : index
    %c2 = arith.constant 2 : index
    %c0_16 = arith.constant 0 : index
    %c0_17 = arith.constant 0 : index
    %12 = vector.load %arg1[%c0_15, %c2, %c0_16, %c0_17] : memref<1x4x4x64xf32, #tpu.memory_space<vmem>>, vector<1x1x4x64xf32>
    %13 = vector.shape_cast %12 : vector<1x1x4x64xf32> to vector<4x64xf32>
    %c2_18 = arith.constant 2 : index
    %c0_19 = arith.constant 0 : index
    %c0_20 = arith.constant 0 : index
    %14 = vector.load %arg2[%c2_18, %c0_19, %c0_20] : memref<4x64x128xf32, #tpu.memory_space<vmem>>, vector<1x64x128xf32>
    %15 = vector.shape_cast %14 : vector<1x64x128xf32> to vector<64x128xf32>
    %cst_21 = arith.constant dense<0.000000e+00> : vector<4x128xf32>
    %16 = tpu.matmul %13, %15, %cst_21 {dimension_numbers = #tpu.dot_dimension_numbers<[1], [0], [0], [1], [0, 0, 1, 1], [], []>} : vector<4x64xf32>, vector<64x128xf32>, vector<4x128xf32> -> vector<4x128xf32>
    %17 = arith.addf %11, %16 : vector<4x128xf32>
    %c0_22 = arith.constant 0 : index
    %c3 = arith.constant 3 : index
    %c0_23 = arith.constant 0 : index
    %c0_24 = arith.constant 0 : index
    %18 = vector.load %arg1[%c0_22, %c3, %c0_23, %c0_24] : memref<1x4x4x64xf32, #tpu.memory_space<vmem>>, vector<1x1x4x64xf32>
    %19 = vector.shape_cast %18 : vector<1x1x4x64xf32> to vector<4x64xf32>
    %c3_25 = arith.constant 3 : index
    %c0_26 = arith.constant 0 : index
    %c0_27 = arith.constant 0 : index
    %20 = vector.load %arg2[%c3_25, %c0_26, %c0_27] : memref<4x64x128xf32, #tpu.memory_space<vmem>>, vector<1x64x128xf32>
    %21 = vector.shape_cast %20 : vector<1x64x128xf32> to vector<64x128xf32>
    %cst_28 = arith.constant dense<0.000000e+00> : vector<4x128xf32>
    %22 = tpu.matmul %19, %21, %cst_28 {dimension_numbers = #tpu.dot_dimension_numbers<[1], [0], [0], [1], [0, 0, 1, 1], [], []>} : vector<4x64xf32>, vector<64x128xf32>, vector<4x128xf32> -> vector<4x128xf32>
    %23 = arith.addf %17, %22 : vector<4x128xf32>
    %24 = vector.broadcast %0 : vector<1x128xf32> to vector<4x128xf32>
    %25 = arith.addf %23, %24 : vector<4x128xf32>
    %c0_29 = arith.constant 0 : index
    %c0_30 = arith.constant 0 : index
    %c0_31 = arith.constant 0 : index
    %26 = vector.load %arg4[%c0_29, %c0_30, %c0_31] : memref<1x4x128xf32, #tpu.memory_space<vmem>>, vector<1x4x128xf32>
    %27 = vector.shape_cast %26 : vector<1x4x128xf32> to vector<4x128xf32>
    %28 = vector.shape_cast %25 : vector<4x128xf32> to vector<1x4x128xf32>
    tpu.vector_store %arg4[%c0_29, %c0_30, %c0_31], %28 {strides = array<i32>} : memref<1x4x128xf32, #tpu.memory_space<vmem>>, vector<1x4x128xf32>,
    return
  }
  func.func @transform_0(%arg0: i32) -> (i32, i32, i32, i32) {
    %c0_i32 = arith.constant 0 : i32
    %c0_i32_0 = arith.constant 0 : i32
    %c0_i32_1 = arith.constant 0 : i32
    %c0_i32_2 = arith.constant 0 : i32
    return %arg0, %c0_i32, %c0_i32_0, %c0_i32_1 : i32, i32, i32, i32
  }
  func.func @transform_1(%arg0: i32) -> (i32, i32, i32) {
    %c0_i32 = arith.constant 0 : i32
    %c0_i32_0 = arith.constant 0 : i32
    %c0_i32_1 = arith.constant 0 : i32
    %c0_i32_2 = arith.constant 0 : i32
    return %c0_i32, %c0_i32_0, %c0_i32_1 : i32, i32, i32
  }
  func.func @transform_2(%arg0: i32) -> (i32, i32) {
    %c0_i32 = arith.constant 0 : i32
    %c0_i32_0 = arith.constant 0 : i32
    %c0_i32_1 = arith.constant 0 : i32
    return %c0_i32, %c0_i32_0 : i32, i32
  }
  func.func @transform_3(%arg0: i32) -> (i32, i32, i32) {
    %c0_i32 = arith.constant 0 : i32
    %c0_i32_0 = arith.constant 0 : i32
    %c0_i32_1 = arith.constant 0 : i32
    return %arg0, %c0_i32, %c0_i32_0 : i32, i32, i32
  }
}

</mosaic_0001>

<llo_original>
// kernel: tpu_custom_call.1
$region0: #{tpu_custom_call.1}
  #allocation0 [shape = 'u32[]', space=smem, size = 0x4, offset = 0x4, fixed_abs, tag = 'smem constant byte address 0x4 - core index']
  #allocation1 [shape = 'u32[144,128]{1,0:T(1,128)}', space=vmem, size = 0x12000, scoped, tag = 'internal scratch']
  %s0 = inlined_call_operand.hbm [shape: f32[2,4,4,64], index: 0, kind: input, shape index: {}]
  %s1 = inlined_call_operand.hbm [shape: f32[4,64,128], index: 1, kind: input, shape index: {}]
  %s2 = inlined_call_operand.vmem [shape: f32[1,128], index: 2, kind: input, shape index: {}]
  %s3 = inlined_call_operand.hbm [shape: f32[2,4,128], index: 3, kind: output, shape index: {}]
  %s4 = sld [smem:[#allocation0]]
  $region53: #{tpu_custom_call.1} parent=0
    _
  %s6 = ssub.s32 1, %s4
  %s7 = scalar_select 0, %s6, %s4
  $region1: #{tpu_custom_call.1} parent=0
    #allocation2 [shape = 'u8[16384]{0}', space=vmem, size = 0x4000, scoped, tag = 'input window, operand 0']
    #allocation3 [shape = 's32[2]{0}', space=sflag, size = 0x8, scoped, tag = 'scoped memory for tpu_custom_call.1']
    #allocation4 [shape = 's32[2]{0}', space=sflag, size = 0x8, scoped, tag = 'scoped memory for tpu_custom_call.1']
    #allocation5 [shape = 'u8[131072]{0}', space=vmem, size = 0x20000, scoped, tag = 'input window, operand 1, single buffered']
    #allocation6 [shape = 's32[1]{0}', space=sflag, size = 0x4, scoped, tag = 'scoped memory for tpu_custom_call.1']
    #allocation7 [shape = 'u8[4096]{0}', space=vmem, size = 0x1000, scoped, tag = 'output window, operand 0']
    %8 = vsyncpa [#allocation3], 0
    %s9 = scalar_lea.sflag [#allocation3], 1
    %10 = vsyncpa %s9, 0
    %11 = vsyncpa [#allocation6], 0
    %12 = vsyncpa [#allocation4], 0
    %s13 = scalar_lea.sflag [#allocation4], 1
    %14 = vsyncpa %s13, 0
    loop: start=0, step=1, limit=4
    $region2: #{tpu_custom_call.1} parent=1 // loop_pre_header
      _
    $region3: #{tpu_custom_call.1} parent=1 // loop_header
      %s16 = sphi 0, %s20
      %p17 = scmp.ge.s32.totalorder %s16, 4
      %s26 = sphi 0, %s28
      %s29 = sphi 0, %s26
      %s30 = sphi 0, %s29
      %s46 = sphi 0, %s30
      %s50 = sphi 0, %s50
      %s52 = sphi 0, %s50
      %s53 = sphi 0, %s52
      %s67 = sphi 0, %s53
      %s71 = sphi 0, %s71
      %s73 = sphi 0, %s71
      %s74 = sphi 0, %s73
      %s88 = sphi 0, %s74
      %s94 = sphi 0, %s96
      %s97 = sphi 0, %s94
      %s98 = sphi 0, %s97
      %s114 = sphi 0, %s98
    $region4: #{tpu_custom_call.1} parent=1 // loop_header_branch
      %19 = sbr.rel (%p17) target = $region8
    $region5: #{tpu_custom_call.1} parent=1 // loop_body
      %s21 = ssub.s32 %s16, 1
      %s22 = ssub.s32 %s16, 2
      %s23 = sadd.s32 %s16, 1
      %s24 = ssub.s32 %s16, %s23
      %p25 = scmp.eq.s32.totalorder %s24, 0
      %s27 = sadd.s32 %s26, 1
      %s28 = scalar_select %p25, %s26, %s27
      %p31 = pneg %p25
      %p32 = scmp.eq.s32.totalorder %s16, 1
      %p33 = por %p31, %p32
      %p34 = scmp.ne.s32.totalorder %s26, %s29
      %p35 = scmp.eq.s32.totalorder %s16, 0
      %p36 = por %p34, %p35
      %p37 = scmp.ne.s32.totalorder %s26, %s29
      %p38 = scmp.eq.s32.totalorder %s21, 1
      %p39 = por %p37, %p38
      %p40 = scmp.ne.s32.totalorder %s29, %s30
      %p41 = scmp.eq.s32.totalorder %s21, 0
      %p42 = por %p40, %p41
      %p43 = scmp.ne.s32.totalorder %s29, %s30
      %p44 = scmp.eq.s32.totalorder %s22, 1
      %p45 = por %p43, %p44
      %p47 = scmp.ne.s32.totalorder %s30, %s46
      %p48 = scmp.eq.s32.totalorder %s22, 0
      %p49 = por %p47, %p48
      %s51 = sadd.s32 %s50, 1
      %p54 = scmp.eq.s32.totalorder %s16, 1
      %p55 = scmp.ne.s32.totalorder %s50, %s52
      %p56 = scmp.eq.s32.totalorder %s16, 0
      %p57 = por %p55, %p56
      %p58 = scmp.ne.s32.totalorder %s50, %s52
      %p59 = scmp.eq.s32.totalorder %s21, 1
      %p60 = por %p58, %p59
      %p61 = scmp.ne.s32.totalorder %s52, %s53
      %p62 = scmp.eq.s32.totalorder %s21, 0
      %p63 = por %p61, %p62
      %p64 = scmp.ne.s32.totalorder %s52, %s53
      %p65 = scmp.eq.s32.totalorder %s22, 1
      %p66 = por %p64, %p65
      %p68 = scmp.ne.s32.totalorder %s53, %s67
      %p69 = scmp.eq.s32.totalorder %s22, 0
      %p70 = por %p68, %p69
      %s72 = sadd.s32 %s71, 1
      %p75 = scmp.eq.s32.totalorder %s16, 1
      %p76 = scmp.ne.s32.totalorder %s71, %s73
      %p77 = scmp.eq.s32.totalorder %s16, 0
      %p78 = por %p76, %p77
      %p79 = scmp.ne.s32.totalorder %s71, %s73
      %p80 = scmp.eq.s32.totalorder %s21, 1
      %p81 = por %p79, %p80
      %p82 = scmp.ne.s32.totalorder %s73, %s74
      %p83 = scmp.eq.s32.totalorder %s21, 0
      %p84 = por %p82, %p83
      %p85 = scmp.ne.s32.totalorder %s73, %s74
      %p86 = scmp.eq.s32.totalorder %s22, 1
      %p87 = por %p85, %p86
      %p89 = scmp.ne.s32.totalorder %s74, %s88
      %p90 = scmp.eq.s32.totalorder %s22, 0
      %p91 = por %p89, %p90
      %s92 = ssub.s32 %s16, %s23
      %p93 = scmp.eq.s32.totalorder %s92, 0
      %s95 = sadd.s32 %s94, 1
      %s96 = scalar_select %p93, %s94, %s95
      %p99 = pneg %p93
      %p100 = scmp.eq.s32.totalorder %s16, 1
      %p101 = por %p99, %p100
      %p102 = scmp.ne.s32.totalorder %s94, %s97
      %p103 = scmp.eq.s32.totalorder %s16, 0
      %p104 = por %p102, %p103
      %p105 = scmp.ne.s32.totalorder %s94, %s97
      %p106 = scmp.eq.s32.totalorder %s21, 1
      %p107 = por %p105, %p106
      %p108 = scmp.ne.s32.totalorder %s97, %s98
      %p109 = scmp.eq.s32.totalorder %s21, 0
      %p110 = por %p108, %p109
      %p111 = scmp.ne.s32.totalorder %s97, %s98
      %p112 = scmp.eq.s32.totalorder %s22, 1
      %p113 = por %p111, %p112
      %p115 = scmp.ne.s32.totalorder %s98, %s114
      %p116 = scmp.eq.s32.totalorder %s22, 0
      %p117 = por %p115, %p116
      %p118 = scmp.le.s32.totalorder 1, %s16
      %p119 = scmp.lt.s32.totalorder %s16, 3
      %p120 = pnand %p118, %p119
      %p121 = pneg %p120
      // Predicated region
      $region9: #{tpu_custom_call.1} parent=5 // pred_check
        _
      $region10: #{tpu_custom_call.1} parent=5 // pred_check_branch
        %123 = sbr.rel (%p120) target = $region12
      $region11: #{tpu_custom_call.1} parent=5 // pred_region
        %s124 = ssub.s32 %s16, 1
        // Predicated region
        $region13: #{tpu_custom_call.1} parent=11 // pred_check
          %p125 = pneg %p63
        $region14: #{tpu_custom_call.1} parent=11 // pred_check_branch
          %127 = sbr.rel (%p125) target = $region16
        $region15: #{tpu_custom_call.1} parent=11 // pred_region
          %s129 = ssub.s32 4096, 4096
          %130 = vsyncadd [#allocation6], %s129
          %s131 = sshll.u32 [#allocation5], 4
          %s132 = int_to_ptr.vmem [resolvable:$true] %s131
          %137 = dma.hbm_to_vmem [thread:$0]  %s1, 4096, %s132, [#allocation6], 128, 128, 8
        $region16: #{tpu_custom_call.1} parent=11 // pred_fallthru
          _
        // Predicated region
        $region17: #{tpu_custom_call.1} parent=11 // pred_check
          %p138 = pneg %p84
        $region18: #{tpu_custom_call.1} parent=11 // pred_check_branch
          %140 = sbr.rel (%p138) target = $region20
        $region19: #{tpu_custom_call.1} parent=11 // pred_region
          _
        $region20: #{tpu_custom_call.1} parent=11 // pred_fallthru
          _
      $region12: #{tpu_custom_call.1} parent=5 // pred_fallthru
        _
      %p141 = scmp.lt.s32.totalorder %s16, 2
      // Predicated region
      $region21: #{tpu_custom_call.1} parent=5 // pred_check
        %p142 = pneg %p141
      $region22: #{tpu_custom_call.1} parent=5 // pred_check_branch
        %144 = sbr.rel (%p142) target = $region24
      $region23: #{tpu_custom_call.1} parent=5 // pred_region
        // Predicated region
        $region25: #{tpu_custom_call.1} parent=23 // pred_check
          %p145 = pneg %p36
        $region26: #{tpu_custom_call.1} parent=23 // pred_check_branch
          %147 = sbr.rel (%p145) target = $region28
        $region27: #{tpu_custom_call.1} parent=23 // pred_region
          %s148 = sand.u32 %s26, 1
          %s149 = scalar_lea.sflag [#allocation3], %s148
          %s150 = sand.u32 %s26, 1
          %s151 = smul.addr %s150, 16
          %s152 = scalar_lea.vmem [#allocation2], %s151
          %s154 = ssub.s32 256, 256
          %155 = vsyncadd %s149, %s154
          %s156 = smul.addr %s16, 4
          %s157 = smul.addr %s156, 64
          %s158 = scalar_lea.hbm %s0, %s157
          %s159 = sshll.u32 %s152, 4
          %s160 = int_to_ptr.vmem [resolvable:$true] %s159
          %165 = dma.hbm_to_vmem [thread:$0]  %s158, 256, %s160, %s149, 64, 64, 4
        $region28: #{tpu_custom_call.1} parent=23 // pred_fallthru
          _
      $region24: #{tpu_custom_call.1} parent=5 // pred_fallthru
        _
      %p166 = scmp.le.s32.totalorder 1, %s16
      %p167 = scmp.lt.s32.totalorder %s16, 3
      %p168 = pnand %p166, %p167
      %p169 = pneg %p168
      // Predicated region
      $region29: #{tpu_custom_call.1} parent=5 // pred_check
        _
      $region30: #{tpu_custom_call.1} parent=5 // pred_check_branch
        %171 = sbr.rel (%p168) target = $region32
      $region31: #{tpu_custom_call.1} parent=5 // pred_region
        %s172 = ssub.s32 %s16, 1
        %s173 = sand.u32 %s29, 1
        %s174 = scalar_lea.sflag [#allocation3], %s173
        %s175 = sand.u32 %s29, 1
        %s176 = smul.addr %s175, 16
        %s177 = scalar_lea.vmem [#allocation2], %s176
        // Predicated region
        $region33: #{tpu_custom_call.1} parent=31 // pred_check
          %p178 = pneg %p42
        $region34: #{tpu_custom_call.1} parent=31 // pred_check_branch
          %180 = sbr.rel (%p178) target = $region36
        $region35: #{tpu_custom_call.1} parent=31 // pred_region
          %181 = dma.done %s174, 256
        $region36: #{tpu_custom_call.1} parent=31 // pred_fallthru
          _
        // Predicated region
        $region37: #{tpu_custom_call.1} parent=31 // pred_check
          %p182 = pneg %p63
        $region38: #{tpu_custom_call.1} parent=31 // pred_check_branch
          %184 = sbr.rel (%p182) target = $region40
        $region39: #{tpu_custom_call.1} parent=31 // pred_region
          %185 = dma.done [#allocation6], 4096
        $region40: #{tpu_custom_call.1} parent=31 // pred_fallthru
          _
        %s186 = sand.u32 %s29, 1
        %s187 = scalar_lea.sflag [#allocation3], %s186
        %s188 = sand.u32 %s29, 1
        %s189 = smul.addr %s188, 16
        %s190 = scalar_lea.vmem [#allocation2], %s189
        %p191 = pneg %p42
        %p192 = pneg %p39
        %p193 = pneg %p63
        %p194 = pneg %p60
        %p195 = pneg %p84
        %p196 = pneg %p81
        %p197 = pneg %p110
        %p198 = pneg %p107
        %s199 = sand.u32 %s97, 1
        %s200 = scalar_lea.sflag [#allocation4], %s199
        %s201 = sand.u32 %s97, 1
        %s202 = smul.addr %s201, 4
        %s203 = scalar_lea.vmem [#allocation7], %s202
        %v204 = vld [vmem:[%s2] sm:$0x1]
        %v205 = vld [vmem:[%s177] sm:$0xf]
        %v206 = vld [vmem:[#allocation5] sm:$0xff]
        %v207 = vld [vmem:[#allocation5 + $0x8] sm:$0xff]
        %v208 = vld [vmem:[#allocation5 + $0x10] sm:$0xff]
        %v209 = vld [vmem:[#allocation5 + $0x18] sm:$0xff]
        %v210 = vld [vmem:[#allocation5 + $0x20] sm:$0xff]
        %v211 = vld [vmem:[#allocation5 + $0x28] sm:$0xff]
        %v212 = vld [vmem:[#allocation5 + $0x30] sm:$0xff]
        %v213 = vld [vmem:[#allocation5 + $0x38] sm:$0xff]
        %s214 = scalar_lea.vmem %s177, 4 [#allocation2]
        %v215 = vld [vmem:[%s214] sm:$0xf]
        %s216 = scalar_lea.vmem [#allocation5], 64
        %v217 = vld [vmem:[%s216] sm:$0xff]
        %v218 = vld [vmem:[%s216 + $0x8] sm:$0xff]
        %v219 = vld [vmem:[%s216 + $0x10] sm:$0xff]
        %v220 = vld [vmem:[%s216 + $0x18] sm:$0xff]
        %v221 = vld [vmem:[%s216 + $0x20] sm:$0xff]
        %v222 = vld [vmem:[%s216 + $0x28] sm:$0xff]
        %v223 = vld [vmem:[%s216 + $0x30] sm:$0xff]
        %v224 = vld [vmem:[%s216 + $0x38] sm:$0xff]
        %vm225 = vcmask 523264
        %v227 = vsel %vm225, %v215, 0
        %229 = vmatprep.subr.mxu0 0.0
        %230 = vmatpush1.msra.mxu0 0.0
        %231 = vmatprep.subr.mxu0 0.0
        %232 = vmatpush1.msra.mxu0 0.0
        %233 = vmatprep.subr.mxu0 0.0
        %234 = vmatpush1.msra.mxu0 0.0
        %235 = vmatprep.subr.mxu0 0.0
        %236 = vmatpush1.msra.mxu0 0.0
        %237 = vmatprep.subr.mxu0 0.0
        %238 = vmatpush1.msra.mxu0 0.0
        %239 = vmatprep.subr.mxu0 0.0
        %240 = vmatpush1.msra.mxu0 0.0
        %241 = vmatprep.subr.mxu0 0.0
        %242 = vmatpush1.msra.mxu0 0.0
        %243 = vmatprep.subr.mxu0 0.0
        %244 = vmatpush1.msra.mxu0 0.0
        %245 = vmatprep.subr.mxu0 0.0
        %246 = vmatpush1.msra.mxu0 %v224
        %247 = vmatprep.subr.mxu0 0.0
        %248 = vmatpush1.msra.mxu0 %v223
        %249 = vmatprep.subr.mxu0 0.0
        %250 = vmatpush1.msra.mxu0 %v222
        %251 = vmatprep.subr.mxu0 0.0
        %252 = vmatpush1.msra.mxu0 %v221
        %253 = vmatprep.subr.mxu0 0.0
        %254 = vmatpush1.msra.mxu0 %v220
        %255 = vmatprep.subr.mxu0 0.0
        %256 = vmatpush1.msra.mxu0 %v219
        %257 = vmatprep.subr.mxu0 0.0
        %258 = vmatpush1.msra.mxu0 %v218
        %259 = vmatprep.subr.mxu0 0.0
        %260 = vmatpush1.msra.mxu0 %v217
        %261 = vmatprep.subr.mxu0 0.0
        %262 = vmatpush2.msra.mxu0 0.0
        %263 = vmatprep.subr.mxu0 0.0
        %264 = vmatpush2.msra.mxu0 0.0
        %265 = vmatprep.subr.mxu0 0.0
        %266 = vmatpush2.msra.mxu0 0.0
        %267 = vmatprep.subr.mxu0 0.0
        %268 = vmatpush2.msra.mxu0 0.0
        %269 = vmatprep.subr.mxu0 0.0
        %270 = vmatpush2.msra.mxu0 0.0
        %271 = vmatprep.subr.mxu0 0.0
        %272 = vmatpush2.msra.mxu0 0.0
        %273 = vmatprep.subr.mxu0 0.0
        %274 = vmatpush2.msra.mxu0 0.0
        %275 = vmatprep.subr.mxu0 0.0
        %276 = vmatpush2.msra.mxu0 0.0
        %277 = vmatprep.subr.mxu0 0.0
        %278 = vmatpush2.msra.mxu0 0.0
        %279 = vmatprep.subr.mxu0 0.0
        %280 = vmatpush2.msra.mxu0 0.0
        %281 = vmatprep.subr.mxu0 0.0
        %282 = vmatpush2.msra.mxu0 0.0
        %283 = vmatprep.subr.mxu0 0.0
        %284 = vmatpush2.msra.mxu0 0.0
        %285 = vmatprep.subr.mxu0 0.0
        %286 = vmatpush2.msra.mxu0 0.0
        %287 = vmatprep.subr.mxu0 0.0
        %288 = vmatpush2.msra.mxu0 0.0
        %289 = vmatprep.subr.mxu0 0.0
        %290 = vmatpush2.msra.mxu0 0.0
        %291 = vmatprep.subr.mxu0 0.0
        %292 = vmatpush2.msra.mxu0 0.0
        %293 = vmatprep.mubr.f32.mxu0 0.0
        %294 = vmatmul.mubr.f32.gmra.mxu0 %v227
        %v295 = vpop.f32.mrf.mxu0
        %v296 = vadd.f32 0.0, %v295
        %v297 = vpop.f32.mrf.mxu0
        %298 = vdwg.mxu0
        %v300 = vsel %vm225, %v205, 0
        %302 = vmatprep.subr.mxu0 0.0
        %303 = vmatpush1.msra.mxu0 0.0
        %304 = vmatprep.subr.mxu0 0.0
        %305 = vmatpush1.msra.mxu0 0.0
        %306 = vmatprep.subr.mxu0 0.0
        %307 = vmatpush1.msra.mxu0 0.0
        %308 = vmatprep.subr.mxu0 0.0
        %309 = vmatpush1.msra.mxu0 0.0
        %310 = vmatprep.subr.mxu0 0.0
        %311 = vmatpush1.msra.mxu0 0.0
        %312 = vmatprep.subr.mxu0 0.0
        %313 = vmatpush1.msra.mxu0 0.0
        %314 = vmatprep.subr.mxu0 0.0
        %315 = vmatpush1.msra.mxu0 0.0
        %316 = vmatprep.subr.mxu0 0.0
        %317 = vmatpush1.msra.mxu0 0.0
        %318 = vmatprep.subr.mxu0 0.0
        %319 = vmatpush1.msra.mxu0 %v213
        %320 = vmatprep.subr.mxu0 0.0
        %321 = vmatpush1.msra.mxu0 %v212
        %322 = vmatprep.subr.mxu0 0.0
        %323 = vmatpush1.msra.mxu0 %v211
        %324 = vmatprep.subr.mxu0 0.0
        %325 = vmatpush1.msra.mxu0 %v210
        %326 = vmatprep.subr.mxu0 0.0
        %327 = vmatpush1.msra.mxu0 %v209
        %328 = vmatprep.subr.mxu0 0.0
        %329 = vmatpush1.msra.mxu0 %v208
        %330 = vmatprep.subr.mxu0 0.0
        %331 = vmatpush1.msra.mxu0 %v207
        %332 = vmatprep.subr.mxu0 0.0
        %333 = vmatpush1.msra.mxu0 %v206
        %334 = vmatprep.subr.mxu0 0.0
        %335 = vmatpush2.msra.mxu0 0.0
        %336 = vmatprep.subr.mxu0 0.0
        %337 = vmatpush2.msra.mxu0 0.0
        %338 = vmatprep.subr.mxu0 0.0
        %339 = vmatpush2.msra.mxu0 0.0
        %340 = vmatprep.subr.mxu0 0.0
        %341 = vmatpush2.msra.mxu0 0.0
        %342 = vmatprep.subr.mxu0 0.0
        %343 = vmatpush2.msra.mxu0 0.0
        %344 = vmatprep.subr.mxu0 0.0
        %345 = vmatpush2.msra.mxu0 0.0
        %346 = vmatprep.subr.mxu0 0.0
        %347 = vmatpush2.msra.mxu0 0.0
        %348 = vmatprep.subr.mxu0 0.0
        %349 = vmatpush2.msra.mxu0 0.0
        %350 = vmatprep.subr.mxu0 0.0
        %351 = vmatpush2.msra.mxu0 0.0
        %352 = vmatprep.subr.mxu0 0.0
        %353 = vmatpush2.msra.mxu0 0.0
        %354 = vmatprep.subr.mxu0 0.0
        %355 = vmatpush2.msra.mxu0 0.0
        %356 = vmatprep.subr.mxu0 0.0
        %357 = vmatpush2.msra.mxu0 0.0
        %358 = vmatprep.subr.mxu0 0.0
        %359 = vmatpush2.msra.mxu0 0.0
        %360 = vmatprep.subr.mxu0 0.0
        %361 = vmatpush2.msra.mxu0 0.0
        %362 = vmatprep.subr.mxu0 0.0
        %363 = vmatpush2.msra.mxu0 0.0
        %364 = vmatprep.subr.mxu0 0.0
        %365 = vmatpush2.msra.mxu0 0.0
        %366 = vmatprep.mubr.f32.mxu0 0.0
        %367 = vmatmul.mubr.f32.gmra.mxu0 %v300
        %v368 = vpop.f32.mrf.mxu0
        %v369 = vadd.f32 %v296, %v368
        %v370 = vpop.f32.mrf.mxu0
        %371 = vdwg.mxu0
        %s372 = scalar_lea.vmem %s177, 8 [#allocation2]
        %v373 = vld [vmem:[%s372] sm:$0xf]
        %s374 = scalar_lea.vmem [#allocation5], 128
        %v375 = vld [vmem:[%s374] sm:$0xff]
        %v376 = vld [vmem:[%s374 + $0x8] sm:$0xff]
        %v377 = vld [vmem:[%s374 + $0x10] sm:$0xff]
        %v378 = vld [vmem:[%s374 + $0x18] sm:$0xff]
        %v379 = vld [vmem:[%s374 + $0x20] sm:$0xff]
        %v380 = vld [vmem:[%s374 + $0x28] sm:$0xff]
        %v381 = vld [vmem:[%s374 + $0x30] sm:$0xff]
        %v382 = vld [vmem:[%s374 + $0x38] sm:$0xff]
        %v384 = vsel %vm225, %v373, 0
        %386 = vmatprep.subr.mxu0 0.0
        %387 = vmatpush1.msra.mxu0 0.0
        %388 = vmatprep.subr.mxu0 0.0
        %389 = vmatpush1.msra.mxu0 0.0
        %390 = vmatprep.subr.mxu0 0.0
        %391 = vmatpush1.msra.mxu0 0.0
        %392 = vmatprep.subr.mxu0 0.0
        %393 = vmatpush1.msra.mxu0 0.0
        %394 = vmatprep.subr.mxu0 0.0
        %395 = vmatpush1.msra.mxu0 0.0
        %396 = vmatprep.subr.mxu0 0.0
        %397 = vmatpush1.msra.mxu0 0.0
        %398 = vmatprep.subr.mxu0 0.0
        %399 = vmatpush1.msra.mxu0 0.0
        %400 = vmatprep.subr.mxu0 0.0
        %401 = vmatpush1.msra.mxu0 0.0
        %402 = vmatprep.subr.mxu0 0.0
        %403 = vmatpush1.msra.mxu0 %v382
        %404 = vmatprep.subr.mxu0 0.0
        %405 = vmatpush1.msra.mxu0 %v381
        %406 = vmatprep.subr.mxu0 0.0
        %407 = vmatpush1.msra.mxu0 %v380
        %408 = vmatprep.subr.mxu0 0.0
        %409 = vmatpush1.msra.mxu0 %v379
        %410 = vmatprep.subr.mxu0 0.0
        %411 = vmatpush1.msra.mxu0 %v378
        %412 = vmatprep.subr.mxu0 0.0
        %413 = vmatpush1.msra.mxu0 %v377
        %414 = vmatprep.subr.mxu0 0.0
        %415 = vmatpush1.msra.mxu0 %v376
        %416 = vmatprep.subr.mxu0 0.0
        %417 = vmatpush1.msra.mxu0 %v375
        %418 = vmatprep.subr.mxu0 0.0
        %419 = vmatpush2.msra.mxu0 0.0
        %420 = vmatprep.subr.mxu0 0.0
        %421 = vmatpush2.msra.mxu0 0.0
        %422 = vmatprep.subr.mxu0 0.0
        %423 = vmatpush2.msra.mxu0 0.0
        %424 = vmatprep.subr.mxu0 0.0
        %425 = vmatpush2.msra.mxu0 0.0
        %426 = vmatprep.subr.mxu0 0.0
        %427 = vmatpush2.msra.mxu0 0.0
        %428 = vmatprep.subr.mxu0 0.0
        %429 = vmatpush2.msra.mxu0 0.0
        %430 = vmatprep.subr.mxu0 0.0
        %431 = vmatpush2.msra.mxu0 0.0
        %432 = vmatprep.subr.mxu0 0.0
        %433 = vmatpush2.msra.mxu0 0.0
        %434 = vmatprep.subr.mxu0 0.0
        %435 = vmatpush2.msra.mxu0 0.0
        %436 = vmatprep.subr.mxu0 0.0
        %437 = vmatpush2.msra.mxu0 0.0
        %438 = vmatprep.subr.mxu0 0.0
        %439 = vmatpush2.msra.mxu0 0.0
        %440 = vmatprep.subr.mxu0 0.0
        %441 = vmatpush2.msra.mxu0 0.0
        %442 = vmatprep.subr.mxu0 0.0
        %443 = vmatpush2.msra.mxu0 0.0
        %444 = vmatprep.subr.mxu0 0.0
        %445 = vmatpush2.msra.mxu0 0.0
        %446 = vmatprep.subr.mxu0 0.0
        %447 = vmatpush2.msra.mxu0 0.0
        %448 = vmatprep.subr.mxu0 0.0
        %449 = vmatpush2.msra.mxu0 0.0
        %450 = vmatprep.mubr.f32.mxu0 0.0
        %451 = vmatmul.mubr.f32.gmra.mxu0 %v384
        %v452 = vpop.f32.mrf.mxu0
        %v453 = vadd.f32 0.0, %v452
        %v454 = vpop.f32.mrf.mxu0
        %455 = vdwg.mxu0
        %v456 = vadd.f32 %v369, %v453
        %s457 = scalar_lea.vmem %s177, 12 [#allocation2]
        %v458 = vld [vmem:[%s457] sm:$0xf]
        %s459 = scalar_lea.vmem [#allocation5], 192
        %v460 = vld [vmem:[%s459] sm:$0xff]
        %v461 = vld [vmem:[%s459 + $0x8] sm:$0xff]
        %v462 = vld [vmem:[%s459 + $0x10] sm:$0xff]
        %v463 = vld [vmem:[%s459 + $0x18] sm:$0xff]
        %v464 = vld [vmem:[%s459 + $0x20] sm:$0xff]
        %v465 = vld [vmem:[%s459 + $0x28] sm:$0xff]
        %v466 = vld [vmem:[%s459 + $0x30] sm:$0xff]
        %v467 = vld [vmem:[%s459 + $0x38] sm:$0xff]
        %v469 = vsel %vm225, %v458, 0
        %471 = vmatprep.subr.mxu0 0.0
        %472 = vmatpush1.msra.mxu0 0.0
        %473 = vmatprep.subr.mxu0 0.0
        %474 = vmatpush1.msra.mxu0 0.0
        %475 = vmatprep.subr.mxu0 0.0
        %476 = vmatpush1.msra.mxu0 0.0
        %477 = vmatprep.subr.mxu0 0.0
        %478 = vmatpush1.msra.mxu0 0.0
        %479 = vmatprep.subr.mxu0 0.0
        %480 = vmatpush1.msra.mxu0 0.0
        %481 = vmatprep.subr.mxu0 0.0
        %482 = vmatpush1.msra.mxu0 0.0
        %483 = vmatprep.subr.mxu0 0.0
        %484 = vmatpush1.msra.mxu0 0.0
        %485 = vmatprep.subr.mxu0 0.0
        %486 = vmatpush1.msra.mxu0 0.0
        %487 = vmatprep.subr.mxu0 0.0
        %488 = vmatpush1.msra.mxu0 %v467
        %489 = vmatprep.subr.mxu0 0.0
        %490 = vmatpush1.msra.mxu0 %v466
        %491 = vmatprep.subr.mxu0 0.0
        %492 = vmatpush1.msra.mxu0 %v465
        %493 = vmatprep.subr.mxu0 0.0
        %494 = vmatpush1.msra.mxu0 %v464
        %495 = vmatprep.subr.mxu0 0.0
        %496 = vmatpush1.msra.mxu0 %v463
        %497 = vmatprep.subr.mxu0 0.0
        %498 = vmatpush1.msra.mxu0 %v462
        %499 = vmatprep.subr.mxu0 0.0
        %500 = vmatpush1.msra.mxu0 %v461
        %501 = vmatprep.subr.mxu0 0.0
        %502 = vmatpush1.msra.mxu0 %v460
        %503 = vmatprep.subr.mxu0 0.0
        %504 = vmatpush2.msra.mxu0 0.0
        %505 = vmatprep.subr.mxu0 0.0
        %506 = vmatpush2.msra.mxu0 0.0
        %507 = vmatprep.subr.mxu0 0.0
        %508 = vmatpush2.msra.mxu0 0.0
        %509 = vmatprep.subr.mxu0 0.0
        %510 = vmatpush2.msra.mxu0 0.0
        %511 = vmatprep.subr.mxu0 0.0
        %512 = vmatpush2.msra.mxu0 0.0
        %513 = vmatprep.subr.mxu0 0.0
        %514 = vmatpush2.msra.mxu0 0.0
        %515 = vmatprep.subr.mxu0 0.0
        %516 = vmatpush2.msra.mxu0 0.0
        %517 = vmatprep.subr.mxu0 0.0
        %518 = vmatpush2.msra.mxu0 0.0
        %519 = vmatprep.subr.mxu0 0.0
        %520 = vmatpush2.msra.mxu0 0.0
        %521 = vmatprep.subr.mxu0 0.0
        %522 = vmatpush2.msra.mxu0 0.0
        %523 = vmatprep.subr.mxu0 0.0
        %524 = vmatpush2.msra.mxu0 0.0
        %525 = vmatprep.subr.mxu0 0.0
        %526 = vmatpush2.msra.mxu0 0.0
        %527 = vmatprep.subr.mxu0 0.0
        %528 = vmatpush2.msra.mxu0 0.0
        %529 = vmatprep.subr.mxu0 0.0
        %530 = vmatpush2.msra.mxu0 0.0
        %531 = vmatprep.subr.mxu0 0.0
        %532 = vmatpush2.msra.mxu0 0.0
        %533 = vmatprep.subr.mxu0 0.0
        %534 = vmatpush2.msra.mxu0 0.0
        %535 = vmatprep.mubr.f32.mxu0 0.0
        %536 = vmatmul.mubr.f32.gmra.mxu0 %v469
        %v537 = vpop.f32.mrf.mxu0
        %v538 = vadd.f32 0.0, %v537
        %v539 = vpop.f32.mrf.mxu0
        %540 = vdwg.mxu0
        %v541 = vadd.f32 %v456, %v538
        %v543 = vlaneseq
        %v544 = vshrl.u32 %v543, 7
        %v545 = vsub.s32 0, %v544
        %v546 = vrot.slane %v204, %v545
        %v548 = vadd.f32 %v541, %v546
        %549 = vst [vmem:[%s203] sm:$0xf] %v548
        %s550 = sand.u32 %s97, 1
        %s551 = scalar_lea.sflag [#allocation4], %s550
        %s552 = sand.u32 %s97, 1
        %s553 = smul.addr %s552, 4
        %s554 = scalar_lea.vmem [#allocation7], %s553
        // Predicated region
        $region41: #{tpu_custom_call.1} parent=31 // pred_check
          %p555 = pneg %p107
        $region42: #{tpu_custom_call.1} parent=31 // pred_check_branch
          %557 = sbr.rel (%p555) target = $region44
        $region43: #{tpu_custom_call.1} parent=31 // pred_region
          %s559 = ssub.s32 64, 64
          %560 = vsyncadd %s551, %s559
          %s561 = smul.addr %s21, 64
          %s562 = scalar_lea.hbm %s3, %s561
          %s564 = sshll.u32 %s554, 4
          %s565 = int_to_ptr.vmem [resolvable:$true] %s564
          %567 = dma.vmem_to_hbm [thread:$0]  %s565, 64, %s562, %s551
        $region44: #{tpu_custom_call.1} parent=31 // pred_fallthru
          _
      $region32: #{tpu_custom_call.1} parent=5 // pred_fallthru
        _
      %p568 = scmp.le.s32.totalorder 2, %s16
      // Predicated region
      $region45: #{tpu_custom_call.1} parent=5 // pred_check
        %p569 = pneg %p568
      $region46: #{tpu_custom_call.1} parent=5 // pred_check_branch
        %571 = sbr.rel (%p569) target = $region48
      $region47: #{tpu_custom_call.1} parent=5 // pred_region
        %s572 = ssub.s32 %s16, 2
        // Predicated region
        $region49: #{tpu_custom_call.1} parent=47 // pred_check
          %p573 = pneg %p113
        $region50: #{tpu_custom_call.1} parent=47 // pred_check_branch
          %575 = sbr.rel (%p573) target = $region52
        $region51: #{tpu_custom_call.1} parent=47 // pred_region
          %s576 = sand.u32 %s98, 1
          %s577 = scalar_lea.sflag [#allocation4], %s576
          %s578 = sand.u32 %s98, 1
          %s579 = smul.addr %s578, 4
          %s580 = scalar_lea.vmem [#allocation7], %s579
          %581 = dma.done %s577, 64
        $region52: #{tpu_custom_call.1} parent=47 // pred_fallthru
          _
      $region48: #{tpu_custom_call.1} parent=5 // pred_fallthru
        _
    $region6: #{tpu_custom_call.1} parent=1 // loop_footer
      %s20 = sadd.s32 1, %s16
    $region7: #{tpu_custom_call.1} parent=1 // loop_footer_branch
      %15 = sbr.rel target = $region3
    $region8: #{tpu_custom_call.1} parent=1 // loop_exit
      _
    %582 = vsyncpa [#allocation3], 1
    %s583 = scalar_lea.sflag [#allocation3], 1
    %584 = vsyncpa %s583, 1
    %585 = vsyncpa [#allocation6], 1
    %586 = vsyncpa [#allocation4], 1
    %s587 = scalar_lea.sflag [#allocation4], 1
    %588 = vsyncpa %s587, 1

</llo_original>
